<compile_context>
chip_gen: v7x
topology: tpu7x:2x2x1
jax: 0.10.0
libtpu: 0.0.40
codegen_flags: <defaults>
</compile_context>

<pallas_src>
import functools

import jax
import jax.numpy as jnp
from jax.experimental import pallas as pl
from jax.experimental.pallas import tpu as pltpu

_SCORE = 5.0   # weight on the rotation loss (matches the PyTorch module)
_N_ROT = 3     # first 3 columns are rotation, the rest translation


def _split_sums(sq):
    """Squared diffs [rows, D] -> (rot_sum, trans_sum) f32 scalars."""
    _, D = sq.shape
    # Sublane reduce first so the cross-lane (XLU) work runs on a [1, D]
    # vector instead of the whole block, and only one masked reduce is needed.
    col_sums = jnp.sum(sq, axis=0, keepdims=True)               # [1, D]
    col = jax.lax.broadcasted_iota(jnp.int32, (1, D), 1)
    rot_sum = jnp.sum(jnp.where(col < _N_ROT, col_sums, 0.0))
    total_sum = jnp.sum(col_sums)
    return rot_sum, total_sum - rot_sum


def _pose_loss_single_kernel(pred_ref, target_ref, out_ref, *, n_rows):
    pred = pred_ref[...].astype(jnp.float32)
    target = target_ref[...].astype(jnp.float32)
    diff = pred - target
    rot_sum, trans_sum = _split_sums(diff * diff)

    D = pred_ref.shape[1]
    rot_loss = rot_sum / jnp.float32(n_rows * _N_ROT)
    trans_loss = trans_sum / jnp.float32(n_rows * (D - _N_ROT))
    out_ref[0] = jnp.float32(_SCORE) * rot_loss + trans_loss
    out_ref[1] = rot_loss
    out_ref[2] = trans_loss


def _pose_loss_tiled_kernel(pred_ref, target_ref, out_ref, acc_ref, *, n_rows):
    pid = pl.program_id(0)

    @pl.when(pid == 0)
    def _init():
        acc_ref[0] = jnp.float32(0.0)
        acc_ref[1] = jnp.float32(0.0)

    pred = pred_ref[...].astype(jnp.float32)
    target = target_ref[...].astype(jnp.float32)
    diff = pred - target
    rot_sum, trans_sum = _split_sums(diff * diff)
    acc_ref[0] = acc_ref[0] + rot_sum
    acc_ref[1] = acc_ref[1] + trans_sum

    @pl.when(pid == pl.num_programs(0) - 1)
    def _finalize():
        D = pred_ref.shape[1]
        rot_loss = acc_ref[0] / jnp.float32(n_rows * _N_ROT)
        trans_loss = acc_ref[1] / jnp.float32(n_rows * (D - _N_ROT))
        out_ref[0] = jnp.float32(_SCORE) * rot_loss + trans_loss
        out_ref[1] = rot_loss
        out_ref[2] = trans_loss


def pose_loss(pred, target, *, row_tile=4096):
    """Returns (total_loss, rot_loss, trans_loss), matching PoseLoss.forward."""
    assert pred.shape == target.shape and pred.ndim == 2
    B, D = pred.shape
    assert D > _N_ROT, "expected rotation (3) + at least one translation column"
    out_shape = jax.ShapeDtypeStruct((3,), jnp.float32)

    if B <= row_tile:
        # Single invocation: grid-free, full-array VMEM blocks, SMEM scalars out.
        out = pl.pallas_call(
            functools.partial(_pose_loss_single_kernel, n_rows=B),
            out_shape=out_shape,
            in_specs=[
                pl.BlockSpec(memory_space=pltpu.VMEM),
                pl.BlockSpec(memory_space=pltpu.VMEM),
            ],
            out_specs=pl.BlockSpec(memory_space=pltpu.SMEM),
        )(pred, target)
    else:
        # Batch-tiled reduction with an SMEM accumulator across grid steps.
        row_tile = max(8, (row_tile // 8) * 8)       # sublane-aligned tile
        num_tiles = pl.cdiv(B, row_tile)
        pad = num_tiles * row_tile - B
        if pad:
            # Zero-padded rows have pred == target == 0, so diff == 0 and the
            # padded tail contributes nothing to either sum (means use true B).
            pred = jnp.pad(pred, ((0, pad), (0, 0)))
            target = jnp.pad(target, ((0, pad), (0, 0)))
        out = pl.pallas_call(
            functools.partial(_pose_loss_tiled_kernel, n_rows=B),
            out_shape=out_shape,
            grid=(num_tiles,),
            in_specs=[
                pl.BlockSpec((row_tile, D), lambda i: (i, 0)),
                pl.BlockSpec((row_tile, D), lambda i: (i, 0)),
            ],
            out_specs=pl.BlockSpec(memory_space=pltpu.SMEM),
            scratch_shapes=[pltpu.SMEM((2,), jnp.float32)],
            compiler_params=pltpu.CompilerParams(
                dimension_semantics=("arbitrary",),
                vmem_limit_bytes=32 * 1024 * 1024,   # portable to v7x's 64 MiB VMEM
            ),
        )(pred, target)

    return out[0], out[1], out[2]


def _ref_pose_loss(pred, target):
    rot = jnp.mean((pred[:, :_N_ROT] - target[:, :_N_ROT]) ** 2)
    trans = jnp.mean((pred[:, _N_ROT:] - target[:, _N_ROT:]) ** 2)
    return _SCORE * rot + trans, rot, trans


if __name__ == "__main__":
    key = jax.random.PRNGKey(0)
    k1, k2, k3, k4 = jax.random.split(key, 4)

    # Primary shape: [batch=8, 6] = 3 rotation + 3 translation components.
    B, D = 8, 6
    pred = jax.random.normal(k1, (B, D), dtype=jnp.float32)
    target = jax.random.normal(k2, (B, D), dtype=jnp.float32)

    total_loss, rot_loss, trans_loss = pose_loss(pred, target)
    jax.block_until_ready((total_loss, rot_loss, trans_loss))

    total_ref, rot_ref, trans_ref = _ref_pose_loss(pred, target)
    assert jnp.allclose(rot_loss, rot_ref, rtol=1e-5, atol=1e-6)
    assert jnp.allclose(trans_loss, trans_ref, rtol=1e-5, atol=1e-6)
    assert jnp.allclose(total_loss, total_ref, rtol=1e-5, atol=1e-6)

    # Also exercise the tiled (grid) path with a batch that needs padding.
    B2 = 300
    pred2 = jax.random.normal(k3, (B2, D), dtype=jnp.float32)
    target2 = jax.random.normal(k4, (B2, D), dtype=jnp.float32)
    t2, r2, tr2 = pose_loss(pred2, target2, row_tile=128)
    jax.block_until_ready((t2, r2, tr2))
    t2r, r2r, tr2r = _ref_pose_loss(pred2, target2)
    assert jnp.allclose(r2, r2r, rtol=1e-5, atol=1e-6)
    assert jnp.allclose(tr2, tr2r, rtol=1e-5, atol=1e-6)
    assert jnp.allclose(t2, t2r, rtol=1e-5, atol=1e-6)

    print("KERNEL_OK")
</pallas_src>

<mosaic_0001>
module attributes {stable_mosaic.version = 11 : i64} {
  func.func @_pose_loss_single_kernel(%arg0: memref<8x6xf32, #tpu.memory_space<vmem>>, %arg1: memref<8x6xf32, #tpu.memory_space<vmem>>, %arg2: memref<3xf32, #tpu.memory_space<smem>>) attributes {dimension_semantics = [], scalar_prefetch = 0 : i64, scratch_operands = 0 : i64, tpu.core_type = #tpu.core_type<tc>} {
    %c0 = arith.constant 0 : index
    %c0_0 = arith.constant 0 : index
    %0 = vector.load %arg0[%c0, %c0_0] : memref<8x6xf32, #tpu.memory_space<vmem>>, vector<8x6xf32>
    %c0_1 = arith.constant 0 : index
    %c0_2 = arith.constant 0 : index
    %1 = vector.load %arg1[%c0_1, %c0_2] : memref<8x6xf32, #tpu.memory_space<vmem>>, vector<8x6xf32>
    %2 = arith.subf %0, %1 : vector<8x6xf32>
    %3 = arith.mulf %2, %2 : vector<8x6xf32>
    %cst = arith.constant dense<0.000000e+00> : vector<6xf32>
    %4 = vector.multi_reduction <add>, %3, %cst [0] : vector<8x6xf32> to vector<6xf32>
    %5 = vector.shape_cast %4 : vector<6xf32> to vector<1x6xf32>
    %6 = tpu.iota {dimensions = array<i32: 1>} : vector<1x6xi32>
    %c3_i32 = arith.constant 3 : i32
    %7 = vector.broadcast %c3_i32 : i32 to vector<1x6xi32>
    %8 = arith.cmpi slt, %6, %7 : vector<1x6xi32>
    %cst_3 = arith.constant 0.000000e+00 : f32
    %9 = vector.broadcast %cst_3 : f32 to vector<1x6xf32>
    %10 = arith.select %8, %5, %9 : vector<1x6xi1>, vector<1x6xf32>
    %11 = vector.shape_cast %10 : vector<1x6xf32> to vector<1x1x6xf32>
    %cst_4 = arith.constant dense<0.000000e+00> : vector<1xf32>
    %12 = vector.multi_reduction <add>, %11, %cst_4 [1, 2] : vector<1x1x6xf32> to vector<1xf32>
    %13 = vector.shape_cast %12 : vector<1xf32> to vector<1x1x1xf32>
    %14 = vector.extract %13[0, 0, 0] : f32 from vector<1x1x1xf32>
    %15 = vector.shape_cast %5 : vector<1x6xf32> to vector<1x1x6xf32>
    %cst_5 = arith.constant dense<0.000000e+00> : vector<1xf32>
    %16 = vector.multi_reduction <add>, %15, %cst_5 [1, 2] : vector<1x1x6xf32> to vector<1xf32>
    %17 = vector.shape_cast %16 : vector<1xf32> to vector<1x1x1xf32>
    %18 = vector.extract %17[0, 0, 0] : f32 from vector<1x1x1xf32>
    %19 = arith.subf %18, %14 : f32
    %cst_6 = arith.constant 2.400000e+01 : f32
    %20 = arith.divf %14, %cst_6 : f32
    %cst_7 = arith.constant 2.400000e+01 : f32
    %21 = arith.divf %19, %cst_7 : f32
    %cst_8 = arith.constant 5.000000e+00 : f32
    %22 = arith.mulf %cst_8, %20 : f32
    %23 = arith.addf %22, %21 : f32
    %c0_9 = arith.constant 0 : index
    %24 = memref.load %arg2[%c0_9] : memref<3xf32, #tpu.memory_space<smem>>
    memref.store %23, %arg2[%c0_9] : memref<3xf32, #tpu.memory_space<smem>>
    %c1 = arith.constant 1 : index
    %25 = memref.load %arg2[%c1] : memref<3xf32, #tpu.memory_space<smem>>
    memref.store %20, %arg2[%c1] : memref<3xf32, #tpu.memory_space<smem>>
    %c2 = arith.constant 2 : index
    %26 = memref.load %arg2[%c2] : memref<3xf32, #tpu.memory_space<smem>>
    memref.store %21, %arg2[%c2] : memref<3xf32, #tpu.memory_space<smem>>
    return
  }
}

</mosaic_0001>

<llo_original>
// kernel: tpu_custom_call.1
$region0: #{tpu_custom_call.1}
  #allocation0 [shape = 'u32[]', space=smem, size = 0x4, offset = 0x4, fixed_abs, tag = 'smem constant byte address 0x4 - core index']
  #allocation1 [shape = 'u32[144,128]{1,0:T(1,128)}', space=vmem, size = 0x12000, scoped, tag = 'internal scratch']
  %s0 = inlined_call_operand.hbm [shape: f32[8,6], index: 0, kind: input, shape index: {}]
  %s1 = inlined_call_operand.hbm [shape: f32[8,6], index: 1, kind: input, shape index: {}]
  %s2 = inlined_call_operand.hbm [shape: f32[3], index: 2, kind: output, shape index: {}]
  %s3 = sld [smem:[#allocation0]]
  $region26: #{tpu_custom_call.1} parent=0
    _
  %s5 = ssub.s32 1, %s3
  %s6 = scalar_select 0, %s5, %s3
  $region1: #{tpu_custom_call.1} parent=0
    #allocation2 [shape = 'u8[4096]{0}', space=vmem, size = 0x1000, scoped, tag = 'input window, operand 0, single buffered']
    #allocation3 [shape = 's32[1]{0}', space=sflag, size = 0x4, scoped, tag = 'scoped memory for tpu_custom_call.1']
    #allocation4 [shape = 's32[1]{0}', space=sflag, size = 0x4, scoped, tag = 'scoped memory for tpu_custom_call.1']
    #allocation5 [shape = 'u8[4096]{0}', space=vmem, size = 0x1000, scoped, tag = 'input window, operand 1, single buffered']
    #allocation6 [shape = 's32[1]{0}', space=sflag, size = 0x4, scoped, tag = 'scoped memory for tpu_custom_call.1']
    #allocation7 [shape = 'u8[512]{0}', space=smem, size = 0x200, scoped, tag = 'output window, operand 0, single buffered']
    %7 = vsyncpa [#allocation3], 0
    %8 = vsyncpa [#allocation6], 0
    %9 = vsyncpa [#allocation4], 0
    // Predicated region
    $region2: #{tpu_custom_call.1} parent=1 // pred_check
      _
    $region3: #{tpu_custom_call.1} parent=1 // pred_check_branch
      %11 = sbr.rel (0) target = $region5
    $region4: #{tpu_custom_call.1} parent=1 // pred_region
      %s13 = ssub.s32 128, 128
      %14 = vsyncadd [#allocation3], %s13
      %s16 = sshll.u32 [#allocation2], 4
      %s17 = int_to_ptr.vmem [resolvable:$true] %s16
      %19 = dma.hbm_to_vmem [thread:$0]  %s0, 128, %s17, [#allocation3]
    $region5: #{tpu_custom_call.1} parent=1 // pred_fallthru
      _
    // Predicated region
    $region6: #{tpu_custom_call.1} parent=1 // pred_check
      _
    $region7: #{tpu_custom_call.1} parent=1 // pred_check_branch
      %21 = sbr.rel (0) target = $region9
    $region8: #{tpu_custom_call.1} parent=1 // pred_region
      %s23 = ssub.s32 128, 128
      %24 = vsyncadd [#allocation6], %s23
      %s26 = sshll.u32 [#allocation5], 4
      %s27 = int_to_ptr.vmem [resolvable:$true] %s26
      %29 = dma.hbm_to_vmem [thread:$0]  %s1, 128, %s27, [#allocation6]
    $region9: #{tpu_custom_call.1} parent=1 // pred_fallthru
      _
    // Predicated region
    $region10: #{tpu_custom_call.1} parent=1 // pred_check
      _
    $region11: #{tpu_custom_call.1} parent=1 // pred_check_branch
      %31 = sbr.rel (0) target = $region13
    $region12: #{tpu_custom_call.1} parent=1 // pred_region
      %32 = dma.done [#allocation3], 128
    $region13: #{tpu_custom_call.1} parent=1 // pred_fallthru
      _
    // Predicated region
    $region14: #{tpu_custom_call.1} parent=1 // pred_check
      _
    $region15: #{tpu_custom_call.1} parent=1 // pred_check_branch
      %34 = sbr.rel (0) target = $region17
    $region16: #{tpu_custom_call.1} parent=1 // pred_region
      %35 = dma.done [#allocation6], 128
    $region17: #{tpu_custom_call.1} parent=1 // pred_fallthru
      _
    %v36 = vld [vmem:[#allocation2] sm:$0xff]
    %v37 = vld [vmem:[#allocation5] sm:$0xff]
    %v38 = vsub.f32 %v36, %v37
    %v39 = vmul.f32 %v38, %v38
    %vm40 = vcmask 48128
    %v41 = vsel %vm40, %v39, 0.0
    %v42 = vrot.slane %v41, 4
    %v43 = vadd.f32 %v41, %v42
    %v44 = vrot.slane %v43, 2
    %v45 = vadd.f32 %v43, %v44
    %v46 = vrot.slane %v45, 1
    %v47 = vadd.f32 %v45, %v46
    %v48 = vlaneseq
    %v49 = vand.u32 %v48, 127
    %vm50 = vcmp.lt.s32.totalorder %v49, 3
    %v51 = vsel %vm50, %v47, 0.0
    %vm52 = vcmask 40960
    %v53 = vsel %vm52, %v51, 0.0
    %54 = vadd.xlane.f32.xlu0 %v53
    %v55 = vpop.xlane.xlu0 %54
    %v56 = vrot.slane %v55, 4
    %v57 = vadd.f32 %v55, %v56
    %v58 = vrot.slane %v57, 2
    %v59 = vadd.f32 %v57, %v58
    %v60 = vrot.slane %v59, 1
    %v61 = vadd.f32 %v59, %v60
    %s62 = vtos %v61
    %v63 = vsel %vm52, %v47, 0.0
    %64 = vadd.xlane.f32.xlu0 %v63
    %v65 = vpop.xlane.xlu0 %64
    %v66 = vrot.slane %v65, 4
    %v67 = vadd.f32 %v65, %v66
    %v68 = vrot.slane %v67, 2
    %v69 = vadd.f32 %v67, %v68
    %v70 = vrot.slane %v69, 1
    %v71 = vadd.f32 %v69, %v70
    %s72 = vtos %v71
    %s73 = ssub.f32 %s72, %s62
    %v74 = vrcp.pop 24.0
    %s75 = vtos %v74
    %s76 = smul.f32 %s62, %s75
    %v77 = vrcp.pop 24.0
    %s78 = vtos %v77
    %s79 = smul.f32 %s73, %s78
    %s80 = smul.f32 %s76, 5.0
    %s81 = sadd.f32 %s80, %s79
    %s82 = scalar_lea.smem [#allocation7], 0
    %83 = sst [smem:[%s82]] %s81
    %s84 = scalar_lea.smem [#allocation7], 1
    %85 = sst [smem:[%s84]] %s76
    %s86 = scalar_lea.smem [#allocation7], 2
    %87 = sst [smem:[%s86]] %s79
    // Predicated region
    $region18: #{tpu_custom_call.1} parent=1 // pred_check
      _
    $region19: #{tpu_custom_call.1} parent=1 // pred_check_branch
      %89 = sbr.rel (0) target = $region21
    $region20: #{tpu_custom_call.1} parent=1 // pred_region
      %s91 = ssub.s32 16, 16
      %92 = vsyncadd [#allocation4], %s91
      %95 = dma.smem_to_hbm [#allocation7], 16, %s2, [#allocation4]
    $region21: #{tpu_custom_call.1} parent=1 // pred_fallthru
      _
    // Predicated region
    $region22: #{tpu_custom_call.1} parent=1 // pred_check
      _
    $region23: #{tpu_custom_call.1} parent=1 // pred_check_branch
      %97 = sbr.rel (0) target = $region25
    $region24: #{tpu_custom_call.1} parent=1 // pred_region
      %98 = dma.done [#allocation4], 16
    $region25: #{tpu_custom_call.1} parent=1 // pred_fallthru
      _
    %99 = sfence
    %100 = vsyncpa [#allocation3], 1
    %101 = vsyncpa [#allocation6], 1
    %102 = vsyncpa [#allocation4], 1

</llo_original>
